<compile_context>
chip_gen: v5e
topology: v5e:2x2
jax: 0.10.0
libtpu: 0.0.40
codegen_flags: <defaults>
</compile_context>

<pallas_src>
import functools

import jax
import jax.numpy as jnp
from jax.experimental import pallas as pl
from jax.experimental.pallas import tpu as pltpu

_SUBLANE = 8
_LANE = 128
_TM_CANDIDATES = (2048, 1024, 512, 256, 128, 64, 32, 16, 8)


def _round_up(x, m):
    return (x + m - 1) // m * m


def _vmem_capacity_bytes():
    try:
        cap = int(pltpu.get_tpu_info().vmem_capacity_bytes)
        if cap > 0:
            return cap
    except Exception:
        pass
    return 64 << 20  # conservative fallback: v7x per-TensorCore VMEM


def _budgets():
    cap = _vmem_capacity_bytes()
    # ~96 MiB scoped limit on 128 MiB parts (v5e/v6e), ~48 MiB on v7x.
    vmem_limit = min((cap * 3) // 4, 100 << 20)
    work_budget = (vmem_limit * 17) // 20  # ~85% of the scoped limit
    return vmem_limit, work_budget


# ----------------------------------------------------------------- kernels
def _linear_kernel(x_ref, w_ref, b_ref, o_ref):
    # (TM, F) @ (F, TO) on the MXU with f32 accumulation; bias add on the VPU.
    acc = jnp.dot(x_ref[...], w_ref[...], preferred_element_type=jnp.float32)
    o_ref[...] = (acc + b_ref[...].astype(jnp.float32)).astype(o_ref.dtype)


def _linear_kernel_ktiled(x_ref, w_ref, b_ref, o_ref, acc_ref):
    # Same matmul with the F (reduction) axis tiled as the last grid axis.
    k = pl.program_id(2)

    @pl.when(k == 0)
    def _():
        acc_ref[...] = jnp.zeros_like(acc_ref)

    acc_ref[...] += jnp.dot(x_ref[...], w_ref[...],
                            preferred_element_type=jnp.float32)

    @pl.when(k == pl.num_programs(2) - 1)
    def _():
        o_ref[...] = (acc_ref[...] + b_ref[...].astype(jnp.float32)
                      ).astype(o_ref.dtype)


# ------------------------------------------------------------ tile choosers
def _choose_row_tile(n_rows, x_cols, o_tile, w_block_bytes, itemsize, budget):
    """Largest row tile (multiple of 8) whose double-buffered working set
    (x tile, out tile, bias) + weight block fits the budget; None if even the
    smallest tile does not fit (caller falls back to the K-tiled path)."""
    n_cap = _round_up(max(n_rows, 1), _SUBLANE)
    for cand in _TM_CANDIDATES:
        tm = min(cand, n_cap)
        need = (itemsize * (2 * tm * x_cols + 2 * tm * o_tile + 2 * o_tile)
                + w_block_bytes)
        if need <= budget:
            return tm
    return None


# ------------------------------------------------------------------ wrapper
def linear_pallas(x2d, w, b=None):
    """y = x2d @ w + b.   x2d: (N, F), w: (F, O) (nn.Linear weight transposed),
    b: None | (O,) | (1, O)."""
    N, F = x2d.shape
    O = w.shape[1]
    dtype = x2d.dtype
    itemsize = jnp.dtype(dtype).itemsize

    w = w.astype(dtype)
    if b is None:
        b2 = jnp.zeros((1, O), dtype)
    else:
        b2 = jnp.reshape(b, (1, O)).astype(dtype)

    vmem_limit, budget = _budgets()
    params = functools.partial(pltpu.CompilerParams,
                               vmem_limit_bytes=int(vmem_limit))
    cost = pl.CostEstimate(
        flops=2 * N * F * O,
        bytes_accessed=itemsize * (N * F + F * O + O + N * O),
        transcendentals=0,
    )

    # -------- fast path: whole problem in one block, no grid, no padding ----
    total_bytes = itemsize * (N * F + F * O + O + N * O)
    if 2 * total_bytes <= min(budget // 2, 16 << 20):
        return pl.pallas_call(
            _linear_kernel,
            out_shape=jax.ShapeDtypeStruct((N, O), dtype),
            compiler_params=params(),
            cost_estimate=cost,
        )(x2d, w, b2)

    # -------- O tiling: keep the full weight resident whenever possible -----
    w_bytes = itemsize * F * O
    if 2 * w_bytes <= budget // 2:
        TO, n_o = O, 1                      # full-extent O: no padding, no slice
    else:
        TO = _LANE
        for cand in (1024, 512, 256, 128):  # 256-multiples preferred (v6e/v7x MXU)
            if 2 * itemsize * F * cand <= budget // 2:
                TO = cand
                break
        n_o = pl.cdiv(O, TO)                # ragged last O tile: writes masked
    w_block_bytes = 2 * itemsize * F * TO   # Pallas double-buffers by default

    # -------- row tiling with full-extent F blocks ---------------------------
    TM = _choose_row_tile(N, F, TO, w_block_bytes, itemsize, budget)
    if TM is not None:
        n_rows = pl.cdiv(N, TM)
        # Give the parallel row axis >= 2 tiles so v7x's 2 TensorCores both work.
        if n_rows == 1 and N > _SUBLANE:
            TM = _round_up(-(-N // 2), _SUBLANE)
            n_rows = pl.cdiv(N, TM)
        return pl.pallas_call(
            _linear_kernel,
            out_shape=jax.ShapeDtypeStruct((N, O), dtype),
            grid=(n_rows, n_o),
            in_specs=[
                pl.BlockSpec((TM, F), lambda i, j: (i, 0)),   # x row tile, full F
                pl.BlockSpec((F, TO), lambda i, j: (0, j)),   # weight slab
                pl.BlockSpec((1, TO), lambda i, j: (0, j)),   # bias slab
            ],
            out_specs=pl.BlockSpec((TM, TO), lambda i, j: (i, j)),
            compiler_params=params(
                dimension_semantics=("parallel", "parallel")),
            cost_estimate=cost,
        )(x2d, w, b2)

    # -------- K (F-reduction) tiled path for very large F --------------------
    TK = _LANE
    for cand in (4096, 2048, 1024, 512, 256, 128):
        if 2 * itemsize * cand * _LANE <= budget // 3:
            TK = cand
            break
    if 2 * itemsize * TK * O <= budget // 3:
        TO, n_o = O, 1
    else:
        TO = _LANE
        for cand in (512, 256, 128):
            if 2 * itemsize * TK * cand <= budget // 3:
                TO = cand
                break
        n_o = pl.cdiv(O, TO)

    TM = _SUBLANE
    for cand in _TM_CANDIDATES:
        tm = min(cand, _round_up(N, _SUBLANE))
        need = (itemsize * (2 * tm * TK + 2 * TK * TO + 2 * tm * TO + 2 * TO)
                + 4 * tm * TO)              # + f32 accumulator
        if need <= budget:
            TM = tm
            break

    # K is a reduction axis: out-of-bounds garbage would contaminate the
    # accumulator, so F must be zero-padded to a multiple of TK (exact).
    F_p = _round_up(F, TK)
    x_p = jnp.pad(x2d, ((0, 0), (0, F_p - F))) if F_p != F else x2d
    w_p = jnp.pad(w, ((0, F_p - F), (0, 0))) if F_p != F else w

    return pl.pallas_call(
        _linear_kernel_ktiled,
        out_shape=jax.ShapeDtypeStruct((N, O), dtype),
        grid=(pl.cdiv(N, TM), n_o, F_p // TK),
        in_specs=[
            pl.BlockSpec((TM, TK), lambda i, j, k: (i, k)),
            pl.BlockSpec((TK, TO), lambda i, j, k: (k, j)),
            pl.BlockSpec((1, TO), lambda i, j, k: (0, j)),
        ],
        out_specs=pl.BlockSpec((TM, TO), lambda i, j, k: (i, j)),
        scratch_shapes=[pltpu.VMEM((TM, TO), jnp.float32)],
        compiler_params=params(
            dimension_semantics=("parallel", "parallel", "arbitrary")),
        cost_estimate=cost,
    )(x_p, w_p, b2)


def time_distributed_linear(x, w, b=None, batch_first=True):
    """Pallas equivalent of TimeDistributed(nn.Linear(F, O), batch_first)(x).
    w is the transposed nn.Linear weight, shape (F, O); b is (O,) or (1, O)."""
    if x.ndim <= 2:
        x2d = x if x.ndim == 2 else x[None, :]
        y = linear_pallas(x2d, w, b)
        return y if x.ndim == 2 else y[0]
    F = x.shape[-1]
    y = linear_pallas(x.reshape(-1, F), w, b)   # view, no HBM copy
    O = y.shape[-1]
    if batch_first:
        return y.reshape(x.shape[0], -1, O)
    # Matches PyTorch: y.view(-1, x.size(1), y.size(-1)) for batch_first=False.
    return y.reshape(-1, x.shape[1], O)


if __name__ == "__main__":
    key = jax.random.PRNGKey(0)
    kx, kw, kb, kx2, kw2, kb2 = jax.random.split(key, 6)
    HI = jax.lax.Precision.HIGHEST

    # --- 1) small shape typical of the module (fast single-block path) -----
    B, T, F, O = 2, 8, 32, 32
    x = jax.random.normal(kx, (B, T, F), dtype=jnp.float32)
    w = jax.random.normal(kw, (F, O), dtype=jnp.float32) * 0.05   # nn.Linear weight.T
    b = jax.random.normal(kb, (O,), dtype=jnp.float32) * 0.05
    y = jax.block_until_ready(time_distributed_linear(x, w, b, batch_first=True))
    y_ref = jnp.einsum("btf,fo->bto", x, w, precision=HI) + b
    assert y.shape == (B, T, O)
    assert jnp.allclose(y, y_ref, atol=1e-4, rtol=1e-4)

    # rank-2 passthrough and batch_first=False branches
    y2d = jax.block_until_ready(time_distributed_linear(x[0], w, b))
    assert jnp.allclose(y2d, y_ref[0], atol=1e-4, rtol=1e-4)
    ynb = jax.block_until_ready(time_distributed_linear(x, w, b, batch_first=False))
    assert ynb.shape == (B, T, O)
    assert jnp.allclose(ynb, y_ref, atol=1e-4, rtol=1e-4)

    # --- 2) larger shape: tiled path, ragged last row tile, unaligned O ----
    B2, T2, F2, O2 = 4, 2000, 512, 320          # N = 8000 rows
    x2 = jax.random.normal(kx2, (B2, T2, F2), dtype=jnp.float32)
    w2 = jax.random.normal(kw2, (F2, O2), dtype=jnp.float32) * 0.05
    b2 = jax.random.normal(kb2, (O2,), dtype=jnp.float32) * 0.05
    y2 = jax.block_until_ready(time_distributed_linear(x2, w2, b2))
    y2_ref = jnp.einsum("btf,fo->bto", x2, w2, precision=HI) + b2
    assert y2.shape == (B2, T2, O2)
    assert jnp.allclose(y2, y2_ref, atol=1e-3, rtol=1e-3)

    print("KERNEL_OK")
</pallas_src>

<mosaic_0001>
module attributes {stable_mosaic.version = 11 : i64} {
  func.func @_linear_kernel(%arg0: memref<16x32xf32, #tpu.memory_space<vmem>>, %arg1: memref<32x32xf32, #tpu.memory_space<vmem>>, %arg2: memref<1x32xf32, #tpu.memory_space<vmem>>, %arg3: memref<16x32xf32, #tpu.memory_space<vmem>>) attributes {dimension_semantics = [], scalar_prefetch = 0 : i64, scratch_operands = 0 : i64, tpu.core_type = #tpu.core_type<tc>} {
    %c0 = arith.constant 0 : index
    %c0_0 = arith.constant 0 : index
    %0 = vector.load %arg0[%c0, %c0_0] : memref<16x32xf32, #tpu.memory_space<vmem>>, vector<16x32xf32>
    %c0_1 = arith.constant 0 : index
    %c0_2 = arith.constant 0 : index
    %1 = vector.load %arg1[%c0_1, %c0_2] : memref<32x32xf32, #tpu.memory_space<vmem>>, vector<32x32xf32>
    %cst = arith.constant dense<0.000000e+00> : vector<16x32xf32>
    %2 = tpu.matmul %0, %1, %cst {dimension_numbers = #tpu.dot_dimension_numbers<[1], [0], [0], [1], [0, 0, 1, 1], [], []>} : vector<16x32xf32>, vector<32x32xf32>, vector<16x32xf32> -> vector<16x32xf32>
    %c0_3 = arith.constant 0 : index
    %c0_4 = arith.constant 0 : index
    %3 = vector.load %arg2[%c0_3, %c0_4] : memref<1x32xf32, #tpu.memory_space<vmem>>, vector<1x32xf32>
    %4 = vector.broadcast %3 : vector<1x32xf32> to vector<16x32xf32>
    %5 = arith.addf %2, %4 : vector<16x32xf32>
    %c0_5 = arith.constant 0 : index
    %c0_6 = arith.constant 0 : index
    %6 = vector.load %arg3[%c0_5, %c0_6] : memref<16x32xf32, #tpu.memory_space<vmem>>, vector<16x32xf32>
    tpu.vector_store %arg3[%c0_5, %c0_6], %5 {strides = array<i32>} : memref<16x32xf32, #tpu.memory_space<vmem>>, vector<16x32xf32>,
    return
  }
}

</mosaic_0001>

<llo_original>
// kernel: tpu_custom_call.1
$region0: #{tpu_custom_call.1}
  #allocation0 [shape = 'u32[]', space=smem, size = 0x4, offset = 0x4, fixed_abs, tag = 'smem constant byte address 0x4 - core index']
  #allocation1 [shape = 'u32[72,128]{1,0:T(1,128)}', space=vmem, size = 0x9000, scoped, tag = 'internal scratch']
  %s0 = inlined_call_operand.hbm [shape: f32[16,32], index: 0, kind: input, shape index: {}]
  %s1 = inlined_call_operand.hbm [shape: f32[32,32], index: 1, kind: input, shape index: {}]
  %s2 = inlined_call_operand.vmem [shape: f32[1,32], index: 2, kind: input, shape index: {}]
  %s3 = inlined_call_operand.hbm [shape: f32[16,32], index: 3, kind: output, shape index: {}]
  %s4 = sld [smem:[#allocation0]]
  $region30: #{tpu_custom_call.1} parent=0
    _
  %s6 = ssub.s32 1, %s4
  %s7 = scalar_select 0, %s6, %s4
  $region1: #{tpu_custom_call.1} parent=0
    #allocation2 [shape = 'u8[8192]{0}', space=vmem, size = 0x2000, scoped, tag = 'input window, operand 0, single buffered']
    #allocation3 [shape = 's32[1]{0}', space=sflag, size = 0x4, scoped, tag = 'scoped memory for tpu_custom_call.1']
    #allocation4 [shape = 's32[1]{0}', space=sflag, size = 0x4, scoped, tag = 'scoped memory for tpu_custom_call.1']
    #allocation5 [shape = 'u8[16384]{0}', space=vmem, size = 0x4000, scoped, tag = 'input window, operand 1, single buffered']
    #allocation6 [shape = 's32[1]{0}', space=sflag, size = 0x4, scoped, tag = 'scoped memory for tpu_custom_call.1']
    #allocation7 [shape = 'u8[8192]{0}', space=vmem, size = 0x2000, scoped, tag = 'output window, operand 0, single buffered']
    %8 = vsyncpa [#allocation3], 0
    %9 = vsyncpa [#allocation6], 0
    %10 = vsyncpa [#allocation4], 0
    // Predicated region
    $region2: #{tpu_custom_call.1} parent=1 // pred_check
      _
    $region3: #{tpu_custom_call.1} parent=1 // pred_check_branch
      %12 = sbr.rel (0) target = $region5
    $region4: #{tpu_custom_call.1} parent=1 // pred_region
      %14 = vsyncadd [#allocation3], 0
      %s15 = sshll.u32 %s0, 4
      %s16 = int_to_ptr.hbm [resolvable:$true] %s15
      %s17 = sshll.u32 [#allocation2], 4
      %s18 = int_to_ptr.vmem [resolvable:$true] %s17
      %23 = dma.hbm_to_vmem [thread:$0]  %s16, 256, %s18, [#allocation3], 128, 128, 8
    $region5: #{tpu_custom_call.1} parent=1 // pred_fallthru
      _
    // Predicated region
    $region6: #{tpu_custom_call.1} parent=1 // pred_check
      _
    $region7: #{tpu_custom_call.1} parent=1 // pred_check_branch
      %25 = sbr.rel (0) target = $region9
    $region8: #{tpu_custom_call.1} parent=1 // pred_region
      %27 = vsyncadd [#allocation6], 0
      %s28 = sshll.u32 %s1, 4
      %s29 = int_to_ptr.hbm [resolvable:$true] %s28
      %s30 = sshll.u32 [#allocation5], 4
      %s31 = int_to_ptr.vmem [resolvable:$true] %s30
      %36 = dma.hbm_to_vmem [thread:$0]  %s29, 512, %s31, [#allocation6], 128, 128, 8
    $region9: #{tpu_custom_call.1} parent=1 // pred_fallthru
      _
    // Predicated region
    $region10: #{tpu_custom_call.1} parent=1 // pred_check
      _
    $region11: #{tpu_custom_call.1} parent=1 // pred_check_branch
      %38 = sbr.rel (0) target = $region13
    $region12: #{tpu_custom_call.1} parent=1 // pred_region
      _
    $region13: #{tpu_custom_call.1} parent=1 // pred_fallthru
      _
    // Predicated region
    $region14: #{tpu_custom_call.1} parent=1 // pred_check
      _
    $region15: #{tpu_custom_call.1} parent=1 // pred_check_branch
      %40 = sbr.rel (0) target = $region17
    $region16: #{tpu_custom_call.1} parent=1 // pred_region
      %42 = dma.done [#allocation3], 256
    $region17: #{tpu_custom_call.1} parent=1 // pred_fallthru
      _
    // Predicated region
    $region18: #{tpu_custom_call.1} parent=1 // pred_check
      _
    $region19: #{tpu_custom_call.1} parent=1 // pred_check_branch
      %44 = sbr.rel (0) target = $region21
    $region20: #{tpu_custom_call.1} parent=1 // pred_region
      %46 = dma.done [#allocation6], 512
    $region21: #{tpu_custom_call.1} parent=1 // pred_fallthru
      _
    %v47 = vld [vmem:[#allocation2] sm:$0xff]
    %v48 = vld [vmem:[#allocation2 + $0x8] sm:$0xff]
    %v49 = vld [vmem:[#allocation5] sm:$0xff]
    %v50 = vld [vmem:[#allocation5 + $0x8] sm:$0xff]
    %v51 = vld [vmem:[#allocation5 + $0x10] sm:$0xff]
    %v52 = vld [vmem:[#allocation5 + $0x18] sm:$0xff]
    %v53 = vld [vmem:[%s2] sm:$0x1]
    %v55 = vperm.slane %v53, 0
    %vm57 = vcmask 261120
    %v59 = vsel %vm57, %v47, 0
    %v62 = vsel %vm57, %v48, 0
    %64 = vmatpush.msra.mxu0 0.0
    %65 = vmatpush.msra.mxu0 0.0
    %66 = vmatpush.msra.mxu0 0.0
    %67 = vmatpush.msra.mxu0 0.0
    %68 = vmatpush.msra.mxu0 0.0
    %69 = vmatpush.msra.mxu0 0.0
    %70 = vmatpush.msra.mxu0 0.0
    %71 = vmatpush.msra.mxu0 0.0
    %72 = vmatpush.msra.mxu0 0.0
    %73 = vmatpush.msra.mxu0 0.0
    %74 = vmatpush.msra.mxu0 0.0
    %75 = vmatpush.msra.mxu0 0.0
    %76 = vmatpush.msra.mxu0 %v52
    %77 = vmatpush.msra.mxu0 %v51
    %78 = vmatpush.msra.mxu0 %v50
    %79 = vmatpush.msra.mxu0 %v49
    %80 = vmatmul.f32.gmra.mxu0 %v59
    %v81 = vpop.f32.mrf.mxu0
    %v82 = vadd.f32 %v55, %v81
    %83 = vmatmul.f32.gmra.mxu0 %v62
    %v84 = vpop.f32.mrf.mxu0
    %v85 = vadd.f32 %v55, %v84
    %86 = vdwg.mxu0
    %87 = vst.msk [vmem:[#allocation7] sm:$0xff] %vm57, %v82
    %88 = vst.msk [vmem:[#allocation7 + $0x8] sm:$0xff] %vm57, %v85
    // Predicated region
    $region22: #{tpu_custom_call.1} parent=1 // pred_check
      _
    $region23: #{tpu_custom_call.1} parent=1 // pred_check_branch
      %90 = sbr.rel (0) target = $region25
    $region24: #{tpu_custom_call.1} parent=1 // pred_region
      %92 = vsyncadd [#allocation4], 0
      %s93 = sshll.u32 [#allocation7], 4
      %s94 = int_to_ptr.vmem [resolvable:$true] %s93
      %s95 = sshll.u32 %s3, 4
      %s96 = int_to_ptr.hbm [resolvable:$true] %s95
      %101 = dma.vmem_to_hbm [thread:$0]  %s94, 256, %s96, [#allocation4], 128, 128, 8
    $region25: #{tpu_custom_call.1} parent=1 // pred_fallthru
      _
    // Predicated region
    $region26: #{tpu_custom_call.1} parent=1 // pred_check
      _
    $region27: #{tpu_custom_call.1} parent=1 // pred_check_branch
      %103 = sbr.rel (0) target = $region29
    $region28: #{tpu_custom_call.1} parent=1 // pred_region
      %105 = dma.done [#allocation4], 256
    $region29: #{tpu_custom_call.1} parent=1 // pred_fallthru
      _
    %106 = vsyncpa [#allocation3], 1
    %107 = vsyncpa [#allocation6], 1
    %108 = vsyncpa [#allocation4], 1

</llo_original>
